<compile_context>
chip_gen: v6e
topology: v6e:2x2x1
jax: 0.10.0
libtpu: 0.0.40
codegen_flags: <defaults>
</compile_context>

<pallas_src>
import jax
import jax.numpy as jnp
from jax.experimental import pallas as pl
from jax.experimental.pallas import tpu as pltpu


def _round_up(x, m):
    return ((x + m - 1) // m) * m


def _fusion_mlp_kernel(
    geo_ref,    # (TN, G)      bf16  geo tile for this (batch, n-tile)
    bias1_ref,  # (1, 256)     f32   per-batch folded bias: app @ W1[G:] + b1
    w1g_ref,    # (G, 256)     bf16  f1 weight, geo slice
    w2_ref,     # (256, 128)   bf16
    b2_ref,     # (1, 128)     f32
    w3_ref,     # (128, C_pad) bf16  (zero-padded to lane-dense width)
    b3_ref,     # (1, C_pad)   f32
    out_ref,    # (TN, C_pad)  f32
):
    # f1 on the (virtually) concatenated input: geo @ W1[:G] + folded bias.
    h1 = jnp.dot(geo_ref[...], w1g_ref[...], preferred_element_type=jnp.float32)
    h1 = jnp.maximum(h1 + bias1_ref[...], 0.0)

    # f2
    h2 = jnp.dot(h1.astype(jnp.bfloat16), w2_ref[...],
                 preferred_element_type=jnp.float32)
    h2 = jnp.maximum(h2 + b2_ref[...], 0.0)

    # f3 (lane-dense padded output width)
    h3 = jnp.dot(h2.astype(jnp.bfloat16), w3_ref[...],
                 preferred_element_type=jnp.float32)
    h3 = jnp.maximum(h3 + b3_ref[...], 0.0)

    out_ref[...] = h3.astype(out_ref.dtype)


def early_code_fusion_mlp_v3(geo_code, app_code, params, *, tile_n=1024):
    """geo_code: (B, N, G) f32, app_code: (B, 1, A) f32 -> (B, N, C_out) f32."""
    B, N, G = geo_code.shape
    _, _, A = app_code.shape

    w1, b1 = params["w1"], params["b1"]   # (G+A, 256), (1, 256)
    w2, b2 = params["w2"], params["b2"]   # (256, 128), (1, 128)
    w3, b3 = params["w3"], params["b3"]   # (128, C_out), (1, C_out)
    H1 = w1.shape[1]
    C_out = w3.shape[1]

    # Split f1 weight; fold the appearance path into a per-batch bias.
    w1g = w1[:G, :]                        # (G, 256)
    w1a = w1[G:, :]                        # (A, 256)
    bias1 = app_code @ w1a + b1            # (B, 1, 256) f32, one batched matmul

    # Lane-dense output: pad C_out up to a multiple of 128 (zeros -> relu(0)=0).
    C_pad = _round_up(C_out, 128)
    if C_pad != C_out:
        w3p = jnp.pad(w3, ((0, 0), (0, C_pad - C_out)))
        b3p = jnp.pad(b3, ((0, 0), (0, C_pad - C_out)))
    else:
        w3p, b3p = w3, b3

    # Tile N; pad N up to a multiple of the tile (row-independent -> safe).
    TN = min(_round_up(tile_n, 8), _round_up(N, 8))
    N_pad = _round_up(N, TN)
    geo_p = geo_code if N_pad == N else jnp.pad(
        geo_code, ((0, 0), (0, N_pad - N), (0, 0)))

    # bf16 operands for the MXU (f32 accumulation inside the kernel).
    geo_bf = geo_p.astype(jnp.bfloat16)
    w1g_bf = w1g.astype(jnp.bfloat16)
    w2_bf = w2.astype(jnp.bfloat16)
    w3_bf = w3p.astype(jnp.bfloat16)

    grid = (B, N_pad // TN)

    def whole(arr):  # small weights: whole array every step (DMA'd once)
        return pl.BlockSpec(arr.shape, lambda b, t: (0,) * arr.ndim)

    out = pl.pallas_call(
        _fusion_mlp_kernel,
        out_shape=jax.ShapeDtypeStruct((B, N_pad, C_pad), jnp.float32),
        grid_spec=pltpu.PrefetchScalarGridSpec(
            num_scalar_prefetch=0,
            grid=grid,
            in_specs=[
                pl.BlockSpec((None, TN, G), lambda b, t: (b, t, 0)),    # geo tile
                pl.BlockSpec((None, 1, H1), lambda b, t: (b, 0, 0)),    # per-batch bias
                whole(w1g_bf),
                whole(w2_bf), whole(b2),
                whole(w3_bf), whole(b3p),
            ],
            out_specs=pl.BlockSpec((None, TN, C_pad), lambda b, t: (b, t, 0)),
        ),
        compiler_params=pltpu.CompilerParams(
            dimension_semantics=("parallel", "parallel"),
        ),
    )(geo_bf, bias1, w1g_bf, w2_bf, b2, w3_bf, b3p)

    return out[:, :N, :C_out]


def init_params(key, geo_in_channel, appear_in_channel, out_feature_channel):
    """Deterministic synthetic parameters (already transposed to (in, out))."""
    ks = jax.random.split(key, 6)

    def lin(kw, kb, fan_in, fan_out):
        bound = 1.0 / jnp.sqrt(jnp.float32(fan_in))
        w = jax.random.uniform(kw, (fan_in, fan_out), jnp.float32, -bound, bound)
        b = jax.random.uniform(kb, (1, fan_out), jnp.float32, -bound, bound)
        return w, b

    w1, b1 = lin(ks[0], ks[1], geo_in_channel + appear_in_channel, 256)
    w2, b2 = lin(ks[2], ks[3], 256, 128)
    w3, b3 = lin(ks[4], ks[5], 128, out_feature_channel)
    return dict(w1=w1, b1=b1, w2=w2, b2=b2, w3=w3, b3=b3)


def reference_forward(geo_code, app_code, params):
    """Plain-JAX reference mirroring the PyTorch forward exactly (f32)."""
    B, N, G = geo_code.shape
    A = app_code.shape[2]
    app = jnp.broadcast_to(app_code, (B, N, A))                 # repeat(1, N, 1)
    x = jnp.concatenate([geo_code, app], axis=2)                # (B, N, G+A)
    x = jax.nn.relu(x @ params["w1"] + params["b1"])
    x = jax.nn.relu(x @ params["w2"] + params["b2"])
    x = jax.nn.relu(x @ params["w3"] + params["b3"])
    return x


if __name__ == "__main__":
    key = jax.random.PRNGKey(0)
    k_geo, k_app, k_par = jax.random.split(key, 3)

    # Small shapes consistent with the module's forward.
    B, N = 2, 8
    geo_in_channel = 32
    appear_in_channel = 32
    out_feature_channel = 16

    geo_code = jax.random.normal(k_geo, (B, N, geo_in_channel), jnp.float32)
    app_code = jax.random.normal(k_app, (B, 1, appear_in_channel), jnp.float32)
    params = init_params(k_par, geo_in_channel, appear_in_channel,
                         out_feature_channel)

    out = early_code_fusion_mlp_v3(geo_code, app_code, params)
    out = jax.block_until_ready(out)

    ref = reference_forward(geo_code, app_code, params)
    assert out.shape == (B, N, out_feature_channel)
    # bf16 matmul operands (f32 accumulation) -> loosened tolerance vs f32 ref.
    assert jnp.allclose(out, ref, atol=3e-2, rtol=3e-2), "mismatch vs reference"

    print("KERNEL_OK")
</pallas_src>

<mosaic_0001>
module attributes {stable_mosaic.version = 11 : i64} {
  func.func @_fusion_mlp_kernel(%arg0: i32, %arg1: i32, %arg2: memref<1x8x32xbf16, #tpu.memory_space<vmem>>, %arg3: memref<1x1x256xf32, #tpu.memory_space<vmem>>, %arg4: memref<32x256xbf16, #tpu.memory_space<vmem>>, %arg5: memref<256x128xbf16, #tpu.memory_space<vmem>>, %arg6: memref<1x128xf32, #tpu.memory_space<vmem>>, %arg7: memref<128x128xbf16, #tpu.memory_space<vmem>>, %arg8: memref<1x128xf32, #tpu.memory_space<vmem>>, %arg9: memref<1x8x128xf32, #tpu.memory_space<vmem>>) attributes {dimension_semantics = [#tpu.dimension_semantics<parallel>, #tpu.dimension_semantics<parallel>], iteration_bounds = array<i64: 2, 1>, scalar_prefetch = 0 : i64, scratch_operands = 0 : i64, tpu.core_type = #tpu.core_type<tc>, window_params = [{transform_indices = @transform_0, window_bounds = array<i64: 1, 8, 32>}, {transform_indices = @transform_1, window_bounds = array<i64: 1, 1, 256>}, {pipeline_mode = #tpu.pipeline_mode<synchronous>, transform_indices = @transform_2, window_bounds = array<i64: 32, 256>}, {pipeline_mode = #tpu.pipeline_mode<synchronous>, transform_indices = @transform_3, window_bounds = array<i64: 256, 128>}, {pipeline_mode = #tpu.pipeline_mode<synchronous>, transform_indices = @transform_4, window_bounds = array<i64: 1, 128>}, {pipeline_mode = #tpu.pipeline_mode<synchronous>, transform_indices = @transform_5, window_bounds = array<i64: 128, 128>}, {pipeline_mode = #tpu.pipeline_mode<synchronous>, transform_indices = @transform_6, window_bounds = array<i64: 1, 128>}, {transform_indices = @transform_7, window_bounds = array<i64: 1, 8, 128>}]} {
    %c0 = arith.constant 0 : index
    %c0_0 = arith.constant 0 : index
    %c0_1 = arith.constant 0 : index
    %0 = vector.load %arg2[%c0, %c0_0, %c0_1] : memref<1x8x32xbf16, #tpu.memory_space<vmem>>, vector<1x8x32xbf16>
    %1 = vector.shape_cast %0 : vector<1x8x32xbf16> to vector<8x32xbf16>
    %c0_2 = arith.constant 0 : index
    %c0_3 = arith.constant 0 : index
    %2 = vector.load %arg4[%c0_2, %c0_3] : memref<32x256xbf16, #tpu.memory_space<vmem>>, vector<32x256xbf16>
    %cst = arith.constant dense<0.000000e+00> : vector<8x256xf32>
    %3 = tpu.matmul %1, %2, %cst {dimension_numbers = #tpu.dot_dimension_numbers<[1], [0], [0], [1], [0, 0, 1, 1], [], []>} : vector<8x32xbf16>, vector<32x256xbf16>, vector<8x256xf32> -> vector<8x256xf32>
    %c0_4 = arith.constant 0 : index
    %c0_5 = arith.constant 0 : index
    %c0_6 = arith.constant 0 : index
    %4 = vector.load %arg3[%c0_4, %c0_5, %c0_6] : memref<1x1x256xf32, #tpu.memory_space<vmem>>, vector<1x1x256xf32>
    %5 = vector.shape_cast %4 : vector<1x1x256xf32> to vector<1x256xf32>
    %6 = vector.broadcast %5 : vector<1x256xf32> to vector<8x256xf32>
    %7 = arith.addf %3, %6 : vector<8x256xf32>
    %cst_7 = arith.constant 0.000000e+00 : f32
    %8 = vector.broadcast %cst_7 : f32 to vector<8x256xf32>
    %9 = arith.maximumf %7, %8 : vector<8x256xf32>
    %10 = arith.truncf %9 : vector<8x256xf32> to vector<8x256xbf16>
    %c0_8 = arith.constant 0 : index
    %c0_9 = arith.constant 0 : index
    %11 = vector.load %arg5[%c0_8, %c0_9] : memref<256x128xbf16, #tpu.memory_space<vmem>>, vector<256x128xbf16>
    %cst_10 = arith.constant dense<0.000000e+00> : vector<8x128xf32>
    %12 = tpu.matmul %10, %11, %cst_10 {dimension_numbers = #tpu.dot_dimension_numbers<[1], [0], [0], [1], [0, 0, 1, 1], [], []>} : vector<8x256xbf16>, vector<256x128xbf16>, vector<8x128xf32> -> vector<8x128xf32>
    %c0_11 = arith.constant 0 : index
    %c0_12 = arith.constant 0 : index
    %13 = vector.load %arg6[%c0_11, %c0_12] : memref<1x128xf32, #tpu.memory_space<vmem>>, vector<1x128xf32>
    %14 = vector.broadcast %13 : vector<1x128xf32> to vector<8x128xf32>
    %15 = arith.addf %12, %14 : vector<8x128xf32>
    %cst_13 = arith.constant 0.000000e+00 : f32
    %16 = vector.broadcast %cst_13 : f32 to vector<8x128xf32>
    %17 = arith.maximumf %15, %16 : vector<8x128xf32>
    %18 = arith.truncf %17 : vector<8x128xf32> to vector<8x128xbf16>
    %c0_14 = arith.constant 0 : index
    %c0_15 = arith.constant 0 : index
    %19 = vector.load %arg7[%c0_14, %c0_15] : memref<128x128xbf16, #tpu.memory_space<vmem>>, vector<128x128xbf16>
    %cst_16 = arith.constant dense<0.000000e+00> : vector<8x128xf32>
    %20 = tpu.matmul %18, %19, %cst_16 {dimension_numbers = #tpu.dot_dimension_numbers<[1], [0], [0], [1], [0, 0, 1, 1], [], []>} : vector<8x128xbf16>, vector<128x128xbf16>, vector<8x128xf32> -> vector<8x128xf32>
    %c0_17 = arith.constant 0 : index
    %c0_18 = arith.constant 0 : index
    %21 = vector.load %arg8[%c0_17, %c0_18] : memref<1x128xf32, #tpu.memory_space<vmem>>, vector<1x128xf32>
    %22 = vector.broadcast %21 : vector<1x128xf32> to vector<8x128xf32>
    %23 = arith.addf %20, %22 : vector<8x128xf32>
    %cst_19 = arith.constant 0.000000e+00 : f32
    %24 = vector.broadcast %cst_19 : f32 to vector<8x128xf32>
    %25 = arith.maximumf %23, %24 : vector<8x128xf32>
    %c0_20 = arith.constant 0 : index
    %c0_21 = arith.constant 0 : index
    %c0_22 = arith.constant 0 : index
    %26 = vector.load %arg9[%c0_20, %c0_21, %c0_22] : memref<1x8x128xf32, #tpu.memory_space<vmem>>, vector<1x8x128xf32>
    %27 = vector.shape_cast %26 : vector<1x8x128xf32> to vector<8x128xf32>
    %28 = vector.shape_cast %25 : vector<8x128xf32> to vector<1x8x128xf32>
    tpu.vector_store %arg9[%c0_20, %c0_21, %c0_22], %28 {strides = array<i32>} : memref<1x8x128xf32, #tpu.memory_space<vmem>>, vector<1x8x128xf32>,
    return
  }
  func.func @transform_0(%arg0: i32, %arg1: i32) -> (i32, i32, i32) {
    %c0_i32 = arith.constant 0 : i32
    %c0_i32_0 = arith.constant 0 : i32
    return %arg0, %arg1, %c0_i32 : i32, i32, i32
  }
  func.func @transform_1(%arg0: i32, %arg1: i32) -> (i32, i32, i32) {
    %c0_i32 = arith.constant 0 : i32
    %c0_i32_0 = arith.constant 0 : i32
    %c0_i32_1 = arith.constant 0 : i32
    return %arg0, %c0_i32, %c0_i32_0 : i32, i32, i32
  }
  func.func @transform_2(%arg0: i32, %arg1: i32) -> (i32, i32) {
    %c0_i32 = arith.constant 0 : i32
    %c0_i32_0 = arith.constant 0 : i32
    %c0_i32_1 = arith.constant 0 : i32
    return %c0_i32, %c0_i32_0 : i32, i32
  }
  func.func @transform_3(%arg0: i32, %arg1: i32) -> (i32, i32) {
    %c0_i32 = arith.constant 0 : i32
    %c0_i32_0 = arith.constant 0 : i32
    %c0_i32_1 = arith.constant 0 : i32
    return %c0_i32, %c0_i32_0 : i32, i32
  }
  func.func @transform_4(%arg0: i32, %arg1: i32) -> (i32, i32) {
    %c0_i32 = arith.constant 0 : i32
    %c0_i32_0 = arith.constant 0 : i32
    %c0_i32_1 = arith.constant 0 : i32
    return %c0_i32, %c0_i32_0 : i32, i32
  }
  func.func @transform_5(%arg0: i32, %arg1: i32) -> (i32, i32) {
    %c0_i32 = arith.constant 0 : i32
    %c0_i32_0 = arith.constant 0 : i32
    %c0_i32_1 = arith.constant 0 : i32
    return %c0_i32, %c0_i32_0 : i32, i32
  }
  func.func @transform_6(%arg0: i32, %arg1: i32) -> (i32, i32) {
    %c0_i32 = arith.constant 0 : i32
    %c0_i32_0 = arith.constant 0 : i32
    %c0_i32_1 = arith.constant 0 : i32
    return %c0_i32, %c0_i32_0 : i32, i32
  }
  func.func @transform_7(%arg0: i32, %arg1: i32) -> (i32, i32, i32) {
    %c0_i32 = arith.constant 0 : i32
    %c0_i32_0 = arith.constant 0 : i32
    return %arg0, %arg1, %c0_i32 : i32, i32, i32
  }
}

</mosaic_0001>

<llo_original>
// kernel: tpu_custom_call.1
$region0: #{tpu_custom_call.1}
  #allocation0 [shape = 'u32[]', space=smem, size = 0x4, offset = 0x4, fixed_abs, tag = 'smem constant byte address 0x4 - core index']
  #allocation1 [shape = 'u32[144,128]{1,0:T(1,128)}', space=vmem, size = 0x12000, scoped, tag = 'internal scratch']
  %s0 = inlined_call_operand.hbm [shape: bf16[2,8,32], index: 0, kind: input, shape index: {}]
  %s1 = inlined_call_operand.hbm [shape: f32[2,1,256], index: 1, kind: input, shape index: {}]
  %s2 = inlined_call_operand.hbm [shape: bf16[32,256], index: 2, kind: input, shape index: {}]
  %s3 = inlined_call_operand.hbm [shape: bf16[256,128], index: 3, kind: input, shape index: {}]
  %s4 = inlined_call_operand.vmem [shape: f32[1,128], index: 4, kind: input, shape index: {}]
  %s5 = inlined_call_operand.hbm [shape: bf16[128,128], index: 5, kind: input, shape index: {}]
  %s6 = inlined_call_operand.vmem [shape: f32[1,128], index: 6, kind: input, shape index: {}]
  %s7 = inlined_call_operand.hbm [shape: f32[2,8,128], index: 7, kind: output, shape index: {}]
  %s8 = sld [smem:[#allocation0]]
  $region81: #{tpu_custom_call.1} parent=0
    _
  %s10 = ssub.s32 1, %s8
  %s11 = scalar_select 0, %s10, %s8
  $region1: #{tpu_custom_call.1} parent=0
    #allocation2 [shape = 'u8[4096]{0}', space=vmem, size = 0x1000, scoped, tag = 'input window, operand 0']
    #allocation3 [shape = 's32[2]{0}', space=sflag, size = 0x8, scoped, tag = 'scoped memory for tpu_custom_call.1']
    #allocation4 [shape = 's32[2]{0}', space=sflag, size = 0x8, scoped, tag = 'scoped memory for tpu_custom_call.1']
    #allocation5 [shape = 'u8[2048]{0}', space=vmem, size = 0x800, scoped, tag = 'input window, operand 1']
    #allocation6 [shape = 's32[2]{0}', space=sflag, size = 0x8, scoped, tag = 'scoped memory for tpu_custom_call.1']
    #allocation7 [shape = 'u8[16384]{0}', space=vmem, size = 0x4000, scoped, tag = 'input window, operand 2, single buffered']
    #allocation8 [shape = 'u8[65536]{0}', space=vmem, size = 0x10000, scoped, tag = 'input window, operand 3, single buffered']
    #allocation9 [shape = 's32[1]{0}', space=sflag, size = 0x4, scoped, tag = 'scoped memory for tpu_custom_call.1']
    #allocation10 [shape = 'u8[32768]{0}', space=vmem, size = 0x8000, scoped, tag = 'input window, operand 5, single buffered']
    #allocation11 [shape = 'u8[8192]{0}', space=vmem, size = 0x2000, scoped, tag = 'output window, operand 0']
    %12 = vsyncpa [#allocation3], 0
    %s13 = scalar_lea.sflag [#allocation3], 1
    %14 = vsyncpa %s13, 0
    %15 = vsyncpa [#allocation6], 0
    %s16 = scalar_lea.sflag [#allocation6], 1
    %17 = vsyncpa %s16, 0
    %18 = vsyncpa [#allocation9], 0
    %19 = vsyncpa [#allocation4], 0
    %s20 = scalar_lea.sflag [#allocation4], 1
    %21 = vsyncpa %s20, 0
    loop: start=0, step=1, limit=4
    $region2: #{tpu_custom_call.1} parent=1 // loop_pre_header
      _
    $region3: #{tpu_custom_call.1} parent=1 // loop_header
      %s23 = sphi 0, %s27
      %p24 = scmp.ge.s32.totalorder %s23, 4
      %s30 = sphi 0, %s42
      %s31 = sphi 0, %s38
      %s32 = sphi 0, %s30
      %s33 = sphi 0, %s31
      %s34 = sphi 0, %s32
      %s35 = sphi 0, %s33
      %s47 = sphi 0, %s49
      %s50 = sphi 0, %s47
      %s51 = sphi 0, %s50
      %s67 = sphi 0, %s51
      %s73 = sphi 0, %s75
      %s76 = sphi 0, %s73
      %s77 = sphi 0, %s76
      %s93 = sphi 0, %s77
      %s97 = sphi 0, %s97
      %s99 = sphi 0, %s97
      %s100 = sphi 0, %s99
      %s114 = sphi 0, %s100
      %s118 = sphi 0, %s118
      %s120 = sphi 0, %s118
      %s121 = sphi 0, %s120
      %s135 = sphi 0, %s121
      %s139 = sphi 0, %s139
      %s141 = sphi 0, %s139
      %s142 = sphi 0, %s141
      %s156 = sphi 0, %s142
      %s160 = sphi 0, %s160
      %s162 = sphi 0, %s160
      %s163 = sphi 0, %s162
      %s177 = sphi 0, %s163
      %s181 = sphi 0, %s181
      %s183 = sphi 0, %s181
      %s184 = sphi 0, %s183
      %s198 = sphi 0, %s184
      %s206 = sphi 0, %s208
      %s209 = sphi 0, %s206
      %s210 = sphi 0, %s209
      %s226 = sphi 0, %s210
    $region4: #{tpu_custom_call.1} parent=1 // loop_header_branch
      %26 = sbr.rel (%p24) target = $region8
    $region5: #{tpu_custom_call.1} parent=1 // loop_body
      %s28 = ssub.s32 %s23, 1
      %s29 = ssub.s32 %s23, 2
      %s36 = sadd.s32 1, %s31
      %p37 = scmp.ge.s32.totalorder %s36, 1
      %s38 = scalar_select %p37, 0, %s36
      %s39 = sadd.s32 1, %s30
      %s40 = scalar_select %p37, %s39, %s30
      %p41 = scmp.ge.s32.totalorder %s40, 2
      %s42 = scalar_select %p41, 0, %s40
      %s43 = ssub.s32 %s30, %s42
      %s44 = ssub.s32 %s31, %s38
      %s45 = sor.u32 %s43, %s44
      %p46 = scmp.eq.s32.totalorder %s45, 0
      %s48 = sadd.s32 %s47, 1
      %s49 = scalar_select %p46, %s47, %s48
      %p52 = pneg %p46
      %p53 = scmp.eq.s32.totalorder %s23, 1
      %p54 = por %p52, %p53
      %p55 = scmp.ne.s32.totalorder %s47, %s50
      %p56 = scmp.eq.s32.totalorder %s23, 0
      %p57 = por %p55, %p56
      %p58 = scmp.ne.s32.totalorder %s47, %s50
      %p59 = scmp.eq.s32.totalorder %s28, 1
      %p60 = por %p58, %p59
      %p61 = scmp.ne.s32.totalorder %s50, %s51
      %p62 = scmp.eq.s32.totalorder %s28, 0
      %p63 = por %p61, %p62
      %p64 = scmp.ne.s32.totalorder %s50, %s51
      %p65 = scmp.eq.s32.totalorder %s29, 1
      %p66 = por %p64, %p65
      %p68 = scmp.ne.s32.totalorder %s51, %s67
      %p69 = scmp.eq.s32.totalorder %s29, 0
      %p70 = por %p68, %p69
      %s71 = ssub.s32 %s30, %s42
      %p72 = scmp.eq.s32.totalorder %s71, 0
      %s74 = sadd.s32 %s73, 1
      %s75 = scalar_select %p72, %s73, %s74
      %p78 = pneg %p72
      %p79 = scmp.eq.s32.totalorder %s23, 1
      %p80 = por %p78, %p79
      %p81 = scmp.ne.s32.totalorder %s73, %s76
      %p82 = scmp.eq.s32.totalorder %s23, 0
      %p83 = por %p81, %p82
      %p84 = scmp.ne.s32.totalorder %s73, %s76
      %p85 = scmp.eq.s32.totalorder %s28, 1
      %p86 = por %p84, %p85
      %p87 = scmp.ne.s32.totalorder %s76, %s77
      %p88 = scmp.eq.s32.totalorder %s28, 0
      %p89 = por %p87, %p88
      %p90 = scmp.ne.s32.totalorder %s76, %s77
      %p91 = scmp.eq.s32.totalorder %s29, 1
      %p92 = por %p90, %p91
      %p94 = scmp.ne.s32.totalorder %s77, %s93
      %p95 = scmp.eq.s32.totalorder %s29, 0
      %p96 = por %p94, %p95
      %s98 = sadd.s32 %s97, 1
      %p101 = scmp.eq.s32.totalorder %s23, 1
      %p102 = scmp.ne.s32.totalorder %s97, %s99
      %p103 = scmp.eq.s32.totalorder %s23, 0
      %p104 = por %p102, %p103
      %p105 = scmp.ne.s32.totalorder %s97, %s99
      %p106 = scmp.eq.s32.totalorder %s28, 1
      %p107 = por %p105, %p106
      %p108 = scmp.ne.s32.totalorder %s99, %s100
      %p109 = scmp.eq.s32.totalorder %s28, 0
      %p110 = por %p108, %p109
      %p111 = scmp.ne.s32.totalorder %s99, %s100
      %p112 = scmp.eq.s32.totalorder %s29, 1
      %p113 = por %p111, %p112
      %p115 = scmp.ne.s32.totalorder %s100, %s114
      %p116 = scmp.eq.s32.totalorder %s29, 0
      %p117 = por %p115, %p116
      %s119 = sadd.s32 %s118, 1
      %p122 = scmp.eq.s32.totalorder %s23, 1
      %p123 = scmp.ne.s32.totalorder %s118, %s120
      %p124 = scmp.eq.s32.totalorder %s23, 0
      %p125 = por %p123, %p124
      %p126 = scmp.ne.s32.totalorder %s118, %s120
      %p127 = scmp.eq.s32.totalorder %s28, 1
      %p128 = por %p126, %p127
      %p129 = scmp.ne.s32.totalorder %s120, %s121
      %p130 = scmp.eq.s32.totalorder %s28, 0
      %p131 = por %p129, %p130
      %p132 = scmp.ne.s32.totalorder %s120, %s121
      %p133 = scmp.eq.s32.totalorder %s29, 1
      %p134 = por %p132, %p133
      %p136 = scmp.ne.s32.totalorder %s121, %s135
      %p137 = scmp.eq.s32.totalorder %s29, 0
      %p138 = por %p136, %p137
      %s140 = sadd.s32 %s139, 1
      %p143 = scmp.eq.s32.totalorder %s23, 1
      %p144 = scmp.ne.s32.totalorder %s139, %s141
      %p145 = scmp.eq.s32.totalorder %s23, 0
      %p146 = por %p144, %p145
      %p147 = scmp.ne.s32.totalorder %s139, %s141
      %p148 = scmp.eq.s32.totalorder %s28, 1
      %p149 = por %p147, %p148
      %p150 = scmp.ne.s32.totalorder %s141, %s142
      %p151 = scmp.eq.s32.totalorder %s28, 0
      %p152 = por %p150, %p151
      %p153 = scmp.ne.s32.totalorder %s141, %s142
      %p154 = scmp.eq.s32.totalorder %s29, 1
      %p155 = por %p153, %p154
      %p157 = scmp.ne.s32.totalorder %s142, %s156
      %p158 = scmp.eq.s32.totalorder %s29, 0
      %p159 = por %p157, %p158
      %s161 = sadd.s32 %s160, 1
      %p164 = scmp.eq.s32.totalorder %s23, 1
      %p165 = scmp.ne.s32.totalorder %s160, %s162
      %p166 = scmp.eq.s32.totalorder %s23, 0
      %p167 = por %p165, %p166
      %p168 = scmp.ne.s32.totalorder %s160, %s162
      %p169 = scmp.eq.s32.totalorder %s28, 1
      %p170 = por %p168, %p169
      %p171 = scmp.ne.s32.totalorder %s162, %s163
      %p172 = scmp.eq.s32.totalorder %s28, 0
      %p173 = por %p171, %p172
      %p174 = scmp.ne.s32.totalorder %s162, %s163
      %p175 = scmp.eq.s32.totalorder %s29, 1
      %p176 = por %p174, %p175
      %p178 = scmp.ne.s32.totalorder %s163, %s177
      %p179 = scmp.eq.s32.totalorder %s29, 0
      %p180 = por %p178, %p179
      %s182 = sadd.s32 %s181, 1
      %p185 = scmp.eq.s32.totalorder %s23, 1
      %p186 = scmp.ne.s32.totalorder %s181, %s183
      %p187 = scmp.eq.s32.totalorder %s23, 0
      %p188 = por %p186, %p187
      %p189 = scmp.ne.s32.totalorder %s181, %s183
      %p190 = scmp.eq.s32.totalorder %s28, 1
      %p191 = por %p189, %p190
      %p192 = scmp.ne.s32.totalorder %s183, %s184
      %p193 = scmp.eq.s32.totalorder %s28, 0
      %p194 = por %p192, %p193
      %p195 = scmp.ne.s32.totalorder %s183, %s184
      %p196 = scmp.eq.s32.totalorder %s29, 1
      %p197 = por %p195, %p196
      %p199 = scmp.ne.s32.totalorder %s184, %s198
      %p200 = scmp.eq.s32.totalorder %s29, 0
      %p201 = por %p199, %p200
      %s202 = ssub.s32 %s30, %s42
      %s203 = ssub.s32 %s31, %s38
      %s204 = sor.u32 %s202, %s203
      %p205 = scmp.eq.s32.totalorder %s204, 0
      %s207 = sadd.s32 %s206, 1
      %s208 = scalar_select %p205, %s206, %s207
      %p211 = pneg %p205
      %p212 = scmp.eq.s32.totalorder %s23, 1
      %p213 = por %p211, %p212
      %p214 = scmp.ne.s32.totalorder %s206, %s209
      %p215 = scmp.eq.s32.totalorder %s23, 0
      %p216 = por %p214, %p215
      %p217 = scmp.ne.s32.totalorder %s206, %s209
      %p218 = scmp.eq.s32.totalorder %s28, 1
      %p219 = por %p217, %p218
      %p220 = scmp.ne.s32.totalorder %s209, %s210
      %p221 = scmp.eq.s32.totalorder %s28, 0
      %p222 = por %p220, %p221
      %p223 = scmp.ne.s32.totalorder %s209, %s210
      %p224 = scmp.eq.s32.totalorder %s29, 1
      %p225 = por %p223, %p224
      %p227 = scmp.ne.s32.totalorder %s210, %s226
      %p228 = scmp.eq.s32.totalorder %s29, 0
      %p229 = por %p227, %p228
      %p230 = scmp.le.s32.totalorder 1, %s23
      %p231 = scmp.lt.s32.totalorder %s23, 3
      %p232 = pnand %p230, %p231
      %p233 = pneg %p232
      // Predicated region
      $region9: #{tpu_custom_call.1} parent=5 // pred_check
        _
      $region10: #{tpu_custom_call.1} parent=5 // pred_check_branch
        %235 = sbr.rel (%p232) target = $region12
      $region11: #{tpu_custom_call.1} parent=5 // pred_region
        %s236 = ssub.s32 %s23, 1
        // Predicated region
        $region13: #{tpu_custom_call.1} parent=11 // pred_check
          %p237 = pneg %p110
        $region14: #{tpu_custom_call.1} parent=11 // pred_check_branch
          %239 = sbr.rel (%p237) target = $region16
        $region15: #{tpu_custom_call.1} parent=11 // pred_region
          %s241 = ssub.s32 512, 512
          %242 = vsyncadd [#allocation6], %s241
          %s243 = sshll.u32 [#allocation7], 4
          %s244 = int_to_ptr.vmem [resolvable:$true] %s243
          %249 = dma.hbm_to_vmem [thread:$0]  %s2, 512, %s244, [#allocation6], 128, 128, 8
        $region16: #{tpu_custom_call.1} parent=11 // pred_fallthru
          _
        // Predicated region
        $region17: #{tpu_custom_call.1} parent=11 // pred_check
          %p250 = pneg %p131
        $region18: #{tpu_custom_call.1} parent=11 // pred_check_branch
          %252 = sbr.rel (%p250) target = $region20
        $region19: #{tpu_custom_call.1} parent=11 // pred_region
          %s254 = ssub.s32 2048, 2048
          %255 = vsyncadd [#allocation9], %s254
          %s256 = sshll.u32 [#allocation8], 4
          %s257 = int_to_ptr.vmem [resolvable:$true] %s256
          %262 = dma.hbm_to_vmem [thread:$0]  %s3, 2048, %s257, [#allocation9], 64, 64, 4
        $region20: #{tpu_custom_call.1} parent=11 // pred_fallthru
          _
        // Predicated region
        $region21: #{tpu_custom_call.1} parent=11 // pred_check
          %p263 = pneg %p152
        $region22: #{tpu_custom_call.1} parent=11 // pred_check_branch
          %265 = sbr.rel (%p263) target = $region24
        $region23: #{tpu_custom_call.1} parent=11 // pred_region
          _
        $region24: #{tpu_custom_call.1} parent=11 // pred_fallthru
          _
        // Predicated region
        $region25: #{tpu_custom_call.1} parent=11 // pred_check
          %p266 = pneg %p173
        $region26: #{tpu_custom_call.1} parent=11 // pred_check_branch
          %268 = sbr.rel (%p266) target = $region28
        $region27: #{tpu_custom_call.1} parent=11 // pred_region
          %s270 = ssub.s32 1024, 1024
          %271 = vsyncadd [#allocation9], %s270
          %s272 = sshll.u32 [#allocation10], 4
          %s273 = int_to_ptr.vmem [resolvable:$true] %s272
          %278 = dma.hbm_to_vmem [thread:$0]  %s5, 1024, %s273, [#allocation9], 64, 64, 4
        $region28: #{tpu_custom_call.1} parent=11 // pred_fallthru
          _
        // Predicated region
        $region29: #{tpu_custom_call.1} parent=11 // pred_check
          %p279 = pneg %p194
        $region30: #{tpu_custom_call.1} parent=11 // pred_check_branch
          %281 = sbr.rel (%p279) target = $region32
        $region31: #{tpu_custom_call.1} parent=11 // pred_region
          _
        $region32: #{tpu_custom_call.1} parent=11 // pred_fallthru
          _
      $region12: #{tpu_custom_call.1} parent=5 // pred_fallthru
        _
      %p282 = scmp.lt.s32.totalorder %s23, 2
      // Predicated region
      $region33: #{tpu_custom_call.1} parent=5 // pred_check
        %p283 = pneg %p282
      $region34: #{tpu_custom_call.1} parent=5 // pred_check_branch
        %285 = sbr.rel (%p283) target = $region36
      $region35: #{tpu_custom_call.1} parent=5 // pred_region
        // Predicated region
        $region37: #{tpu_custom_call.1} parent=35 // pred_check
          %p286 = pneg %p57
        $region38: #{tpu_custom_call.1} parent=35 // pred_check_branch
          %288 = sbr.rel (%p286) target = $region40
        $region39: #{tpu_custom_call.1} parent=35 // pred_region
          %s289 = sand.u32 %s47, 1
          %s290 = scalar_lea.sflag [#allocation3], %s289
          %s291 = sand.u32 %s47, 1
          %s292 = smul.addr %s291, 4
          %s293 = scalar_lea.vmem [#allocation2], %s292
          %s295 = ssub.s32 64, 64
          %296 = vsyncadd %s290, %s295
          %s297 = sadd.s32 %s31, %s30
          %s298 = smul.addr %s297, 64
          %s299 = scalar_lea.hbm %s0, %s298
          %s301 = sshll.u32 %s293, 4
          %s302 = int_to_ptr.vmem [resolvable:$true] %s301
          %304 = dma.hbm_to_vmem [thread:$0]  %s299, 64, %s302, %s290
        $region40: #{tpu_custom_call.1} parent=35 // pred_fallthru
          _
        // Predicated region
        $region41: #{tpu_custom_call.1} parent=35 // pred_check
          %p305 = pneg %p83
        $region42: #{tpu_custom_call.1} parent=35 // pred_check_branch
          %307 = sbr.rel (%p305) target = $region44
        $region43: #{tpu_custom_call.1} parent=35 // pred_region
          %s308 = sand.u32 %s23, 1
          %s309 = scalar_lea.sflag [#allocation6], %s308
          %s310 = sand.u32 %s73, 1
          %s311 = smul.addr %s310, 2
          %s312 = scalar_lea.vmem [#allocation5], %s311
          %s314 = ssub.s32 32, 32
          %315 = vsyncadd %s309, %s314
          %s316 = smul.addr %s30, 2
          %s317 = smul.addr %s316, 16
          %s318 = scalar_lea.hbm %s1, %s317
          %s320 = sshll.u32 %s312, 4
          %s321 = int_to_ptr.vmem [resolvable:$true] %s320
          %323 = dma.hbm_to_vmem [thread:$0]  %s318, 32, %s321, %s309
        $region44: #{tpu_custom_call.1} parent=35 // pred_fallthru
          _
      $region36: #{tpu_custom_call.1} parent=5 // pred_fallthru
        _
      %p324 = scmp.le.s32.totalorder 1, %s23
      %p325 = scmp.lt.s32.totalorder %s23, 3
      %p326 = pnand %p324, %p325
      %p327 = pneg %p326
      // Predicated region
      $region45: #{tpu_custom_call.1} parent=5 // pred_check
        _
      $region46: #{tpu_custom_call.1} parent=5 // pred_check_branch
        %329 = sbr.rel (%p326) target = $region48
      $region47: #{tpu_custom_call.1} parent=5 // pred_region
        %s330 = ssub.s32 %s23, 1
        %s331 = sand.u32 %s50, 1
        %s332 = scalar_lea.sflag [#allocation3], %s331
        %s333 = sand.u32 %s50, 1
        %s334 = smul.addr %s333, 4
        %s335 = scalar_lea.vmem [#allocation2], %s334
        // Predicated region
        $region49: #{tpu_custom_call.1} parent=47 // pred_check
          %p336 = pneg %p63
        $region50: #{tpu_custom_call.1} parent=47 // pred_check_branch
          %338 = sbr.rel (%p336) target = $region52
        $region51: #{tpu_custom_call.1} parent=47 // pred_region
          %339 = dma.done %s332, 64
        $region52: #{tpu_custom_call.1} parent=47 // pred_fallthru
          _
        %s340 = sand.u32 %s28, 1
        %s341 = scalar_lea.sflag [#allocation6], %s340
        %s342 = sand.u32 %s76, 1
        %s343 = smul.addr %s342, 2
        %s344 = scalar_lea.vmem [#allocation5], %s343
        // Predicated region
        $region53: #{tpu_custom_call.1} parent=47 // pred_check
          %p345 = pneg %p89
        $region54: #{tpu_custom_call.1} parent=47 // pred_check_branch
          %347 = sbr.rel (%p345) target = $region56
        $region55: #{tpu_custom_call.1} parent=47 // pred_region
          %348 = dma.done %s341, 32
        $region56: #{tpu_custom_call.1} parent=47 // pred_fallthru
          _
        // Predicated region
        $region57: #{tpu_custom_call.1} parent=47 // pred_check
          %p349 = pneg %p110
        $region58: #{tpu_custom_call.1} parent=47 // pred_check_branch
          %351 = sbr.rel (%p349) target = $region60
        $region59: #{tpu_custom_call.1} parent=47 // pred_region
          %352 = dma.done [#allocation6], 512
        $region60: #{tpu_custom_call.1} parent=47 // pred_fallthru
          _
        // Predicated region
        $region61: #{tpu_custom_call.1} parent=47 // pred_check
          %p353 = pneg %p131
        $region62: #{tpu_custom_call.1} parent=47 // pred_check_branch
          %355 = sbr.rel (%p353) target = $region64
        $region63: #{tpu_custom_call.1} parent=47 // pred_region
          %356 = dma.done [#allocation9], 2048
        $region64: #{tpu_custom_call.1} parent=47 // pred_fallthru
          _
        // Predicated region
        $region65: #{tpu_custom_call.1} parent=47 // pred_check
          %p357 = pneg %p173
        $region66: #{tpu_custom_call.1} parent=47 // pred_check_branch
          %359 = sbr.rel (%p357) target = $region68
        $region67: #{tpu_custom_call.1} parent=47 // pred_region
          %360 = dma.done [#allocation9], 1024
        $region68: #{tpu_custom_call.1} parent=47 // pred_fallthru
          _
        %s361 = sand.u32 %s50, 1
        %s362 = scalar_lea.sflag [#allocation3], %s361
        %s363 = sand.u32 %s50, 1
        %s364 = smul.addr %s363, 4
        %s365 = scalar_lea.vmem [#allocation2], %s364
        %p366 = pneg %p63
        %p367 = pneg %p60
        %s368 = sand.u32 %s28, 1
        %s369 = scalar_lea.sflag [#allocation6], %s368
        %s370 = sand.u32 %s76, 1
        %s371 = smul.addr %s370, 2
        %s372 = scalar_lea.vmem [#allocation5], %s371
        %p373 = pneg %p89
        %p374 = pneg %p86
        %p375 = pneg %p110
        %p376 = pneg %p107
        %p377 = pneg %p131
        %p378 = pneg %p128
        %p379 = pneg %p152
        %p380 = pneg %p149
        %p381 = pneg %p173
        %p382 = pneg %p170
        %p383 = pneg %p194
        %p384 = pneg %p191
        %p385 = pneg %p222
        %p386 = pneg %p219
        %s387 = sand.u32 %s209, 1
        %s388 = scalar_lea.sflag [#allocation4], %s387
        %s389 = sand.u32 %s209, 1
        %s390 = smul.addr %s389, 8
        %s391 = scalar_lea.vmem [#allocation11], %s390
        %v393 = vld [vmem:[%s335] sm:$0xf]
        %v394 = vld [vmem:[#allocation7] sm:$0xff]
        %v395 = vld [vmem:[#allocation7 + $0x8] sm:$0xff]
        %v396 = vld [vmem:[#allocation7 + $0x10] sm:$0xff]
        %v397 = vld [vmem:[#allocation7 + $0x18] sm:$0xff]
        %v398 = vld [vmem:[%s344] sm:$0x3]
        %v400 = vlaneseq
        %v401 = vshrl.u32 %v400, 7
        %v402 = vsub.s32 0, %v401
        %v403 = vrot.slane %v398, %v402
        %v404 = vlaneseq
        %v405 = vshrl.u32 %v404, 7
        %v406 = vsub.s32 1, %v405
        %v407 = vrot.slane %v398, %v406
        %v414 = vunpack.c.l.b16 %v394
        %v415 = vunpack.c.h.b16 %v394
        %v416 = vunpack.c.l.b16 %v395
        %v417 = vunpack.c.h.b16 %v395
        %v418 = vunpack.c.l.b16 %v396
        %v419 = vunpack.c.h.b16 %v396
        %v420 = vunpack.c.l.b16 %v397
        %v421 = vunpack.c.h.b16 %v397
        %v422 = vpack.c.b16 %v416, %v414
        %v423 = vpack.c.b16 %v417, %v415
        %v424 = vpack.c.b16 %v420, %v418
        %v425 = vpack.c.b16 %v421, %v419
        %vm430 = vcmask 261120
        %v432 = vsel %vm430, %v393, 0
        %434 = vmatprep.subr.bf16.mxu0 0
        %435 = vmatpush1.bf16.msra.mxu0 0
        %436 = vmatprep.subr.bf16.mxu0 0
        %437 = vmatpush1.bf16.msra.mxu0 0
        %438 = vmatprep.subr.bf16.mxu0 0
        %439 = vmatpush1.bf16.msra.mxu0 0
        %440 = vmatprep.subr.bf16.mxu0 0
        %441 = vmatpush1.bf16.msra.mxu0 0
        %442 = vmatprep.subr.bf16.mxu0 0
        %443 = vmatpush1.bf16.msra.mxu0 0
        %444 = vmatprep.subr.bf16.mxu0 0
        %445 = vmatpush1.bf16.msra.mxu0 0
        %446 = vmatprep.subr.bf16.mxu0 %v425
        %447 = vmatpush1.bf16.msra.mxu0 %v424
        %448 = vmatprep.subr.bf16.mxu0 %v423
        %449 = vmatpush1.bf16.msra.mxu0 %v422
        %450 = vmatprep.subr.bf16.mxu0 0
        %451 = vmatpush2.bf16.msra.mxu0 0
        %452 = vmatprep.subr.bf16.mxu0 0
        %453 = vmatpush2.bf16.msra.mxu0 0
        %454 = vmatprep.subr.bf16.mxu0 0
        %455 = vmatpush2.bf16.msra.mxu0 0
        %456 = vmatprep.subr.bf16.mxu0 0
        %457 = vmatpush2.bf16.msra.mxu0 0
        %458 = vmatprep.subr.bf16.mxu0 0
        %459 = vmatpush2.bf16.msra.mxu0 0
        %460 = vmatprep.subr.bf16.mxu0 0
        %461 = vmatpush2.bf16.msra.mxu0 0
        %462 = vmatprep.subr.bf16.mxu0 0
        %463 = vmatpush2.bf16.msra.mxu0 0
        %464 = vmatprep.subr.bf16.mxu0 0
        %465 = vmatpush2.bf16.msra.mxu0 0
        %466 = vmatprep.mubr.bf16.mxu0 0
        %467 = vmatmul.mubr.bf16.gmra.mxu0 %v432
        %v468 = vpop.f32.mrf.mxu0
        %v469 = vadd.f32 %v403, %v468
        %v470 = vpop.f32.mrf.mxu0
        %v471 = vadd.f32 %v407, %v470
        %v472 = vpop.f32.mrf.mxu0
        %v473 = vpop.f32.mrf.mxu0
        %474 = vdwg.mxu0
        %v475 = vmax.f32 %v469, 0.0
        %v476 = vmax.f32 %v471, 0.0
        %v477 = vpack.c.bf16 %v475, %v475
        %v478 = vpack.c.bf16 %v476, %v476
        %v479 = vld [vmem:[#allocation8] sm:$0xf]
        %v480 = vld [vmem:[#allocation8 + $0x4] sm:$0xf]
        %v481 = vld [vmem:[#allocation8 + $0x8] sm:$0xf]
        %v482 = vld [vmem:[#allocation8 + $0xc] sm:$0xf]
        %v483 = vld [vmem:[#allocation8 + $0x10] sm:$0xf]
        %v484 = vld [vmem:[#allocation8 + $0x14] sm:$0xf]
        %v485 = vld [vmem:[#allocation8 + $0x18] sm:$0xf]
        %v486 = vld [vmem:[#allocation8 + $0x1c] sm:$0xf]
        %v487 = vld [vmem:[#allocation8 + $0x20] sm:$0xf]
        %v488 = vld [vmem:[#allocation8 + $0x24] sm:$0xf]
        %v489 = vld [vmem:[#allocation8 + $0x28] sm:$0xf]
        %v490 = vld [vmem:[#allocation8 + $0x2c] sm:$0xf]
        %v491 = vld [vmem:[#allocation8 + $0x30] sm:$0xf]
        %v492 = vld [vmem:[#allocation8 + $0x34] sm:$0xf]
        %v493 = vld [vmem:[#allocation8 + $0x38] sm:$0xf]
        %v494 = vld [vmem:[#allocation8 + $0x3c] sm:$0xf]
        %v495 = vld [vmem:[#allocation8 + $0x40] sm:$0xf]
        %v496 = vld [vmem:[#allocation8 + $0x44] sm:$0xf]
        %v497 = vld [vmem:[#allocation8 + $0x48] sm:$0xf]
        %v498 = vld [vmem:[#allocation8 + $0x4c] sm:$0xf]
        %v499 = vld [vmem:[#allocation8 + $0x50] sm:$0xf]
        %v500 = vld [vmem:[#allocation8 + $0x54] sm:$0xf]
        %v501 = vld [vmem:[#allocation8 + $0x58] sm:$0xf]
        %v502 = vld [vmem:[#allocation8 + $0x5c] sm:$0xf]
        %v503 = vld [vmem:[#allocation8 + $0x60] sm:$0xf]
        %v504 = vld [vmem:[#allocation8 + $0x64] sm:$0xf]
        %v505 = vld [vmem:[#allocation8 + $0x68] sm:$0xf]
        %v506 = vld [vmem:[#allocation8 + $0x6c] sm:$0xf]
        %v507 = vld [vmem:[#allocation8 + $0x70] sm:$0xf]
        %v508 = vld [vmem:[#allocation8 + $0x74] sm:$0xf]
        %v509 = vld [vmem:[#allocation8 + $0x78] sm:$0xf]
        %v510 = vld [vmem:[#allocation8 + $0x7c] sm:$0xf]
        %v511 = vld [vmem:[%s4] sm:$0x1]
        %v513 = vlaneseq
        %v514 = vshrl.u32 %v513, 7
        %v515 = vsub.s32 0, %v514
        %v516 = vrot.slane %v511, %v515
        %v550 = vunpack.c.l.b16 %v479
        %v551 = vunpack.c.l.b16 %v480
        %v552 = vunpack.c.l.b16 %v481
        %v553 = vunpack.c.l.b16 %v482
        %v554 = vunpack.c.l.b16 %v483
        %v555 = vunpack.c.l.b16 %v484
        %v556 = vunpack.c.l.b16 %v485
        %v557 = vunpack.c.l.b16 %v486
        %v558 = vunpack.c.l.b16 %v487
        %v559 = vunpack.c.l.b16 %v488
        %v560 = vunpack.c.l.b16 %v489
        %v561 = vunpack.c.l.b16 %v490
        %v562 = vunpack.c.l.b16 %v491
        %v563 = vunpack.c.l.b16 %v492
        %v564 = vunpack.c.l.b16 %v493
        %v565 = vunpack.c.l.b16 %v494
        %v566 = vunpack.c.l.b16 %v495
        %v567 = vunpack.c.l.b16 %v496
        %v568 = vunpack.c.l.b16 %v497
        %v569 = vunpack.c.l.b16 %v498
        %v570 = vunpack.c.l.b16 %v499
        %v571 = vunpack.c.l.b16 %v500
        %v572 = vunpack.c.l.b16 %v501
        %v573 = vunpack.c.l.b16 %v502
        %v574 = vunpack.c.l.b16 %v503
        %v575 = vunpack.c.l.b16 %v504
        %v576 = vunpack.c.l.b16 %v505
        %v577 = vunpack.c.l.b16 %v506
        %v578 = vunpack.c.l.b16 %v507
        %v579 = vunpack.c.l.b16 %v508
        %v580 = vunpack.c.l.b16 %v509
        %v581 = vunpack.c.l.b16 %v510
        %v582 = vpack.c.b16 %v551, %v550
        %v583 = vpack.c.b16 %v553, %v552
        %v584 = vpack.c.b16 %v555, %v554
        %v585 = vpack.c.b16 %v557, %v556
        %v586 = vpack.c.b16 %v559, %v558
        %v587 = vpack.c.b16 %v561, %v560
        %v588 = vpack.c.b16 %v563, %v562
        %v589 = vpack.c.b16 %v565, %v564
        %v590 = vpack.c.b16 %v567, %v566
        %v591 = vpack.c.b16 %v569, %v568
        %v592 = vpack.c.b16 %v571, %v570
        %v593 = vpack.c.b16 %v573, %v572
        %v594 = vpack.c.b16 %v575, %v574
        %v595 = vpack.c.b16 %v577, %v576
        %v596 = vpack.c.b16 %v579, %v578
        %v597 = vpack.c.b16 %v581, %v580
        %614 = vmatprep.subr.bf16.mxu0 0
        %615 = vmatpush1.bf16.msra.mxu0 %v589
        %616 = vmatprep.subr.bf16.mxu0 0
        %617 = vmatpush1.bf16.msra.mxu0 %v588
        %618 = vmatprep.subr.bf16.mxu0 0
        %619 = vmatpush1.bf16.msra.mxu0 %v587
        %620 = vmatprep.subr.bf16.mxu0 0
        %621 = vmatpush1.bf16.msra.mxu0 %v586
        %622 = vmatprep.subr.bf16.mxu0 0
        %623 = vmatpush1.bf16.msra.mxu0 %v585
        %624 = vmatprep.subr.bf16.mxu0 0
        %625 = vmatpush1.bf16.msra.mxu0 %v584
        %626 = vmatprep.subr.bf16.mxu0 0
        %627 = vmatpush1.bf16.msra.mxu0 %v583
        %628 = vmatprep.subr.bf16.mxu0 0
        %629 = vmatpush1.bf16.msra.mxu0 %v582
        %630 = vmatprep.subr.bf16.mxu0 0
        %631 = vmatpush2.bf16.msra.mxu0 %v597
        %632 = vmatprep.subr.bf16.mxu0 0
        %633 = vmatpush2.bf16.msra.mxu0 %v596
        %634 = vmatprep.subr.bf16.mxu0 0
        %635 = vmatpush2.bf16.msra.mxu0 %v595
        %636 = vmatprep.subr.bf16.mxu0 0
        %637 = vmatpush2.bf16.msra.mxu0 %v594
        %638 = vmatprep.subr.bf16.mxu0 0
        %639 = vmatpush2.bf16.msra.mxu0 %v593
        %640 = vmatprep.subr.bf16.mxu0 0
        %641 = vmatpush2.bf16.msra.mxu0 %v592
        %642 = vmatprep.subr.bf16.mxu0 0
        %643 = vmatpush2.bf16.msra.mxu0 %v591
        %644 = vmatprep.subr.bf16.mxu0 0
        %645 = vmatpush2.bf16.msra.mxu0 %v590
        %646 = vmatprep.mubr.bf16.mxu0 %v478
        %647 = vmatmul.mubr.bf16.gmra.mxu0 %v477
        %v648 = vpop.f32.mrf.mxu0
        %v649 = vadd.f32 %v516, %v648
        %v650 = vpop.f32.mrf.mxu0
        %v651 = vpop.f32.mrf.mxu0
        %v652 = vpop.f32.mrf.mxu0
        %653 = vdwg.mxu0
        %v654 = vmax.f32 %v649, 0.0
        %v655 = vpack.c.bf16 %v654, %v654
        %v656 = vld [vmem:[#allocation10] sm:$0xf]
        %v657 = vld [vmem:[#allocation10 + $0x4] sm:$0xf]
        %v658 = vld [vmem:[#allocation10 + $0x8] sm:$0xf]
        %v659 = vld [vmem:[#allocation10 + $0xc] sm:$0xf]
        %v660 = vld [vmem:[#allocation10 + $0x10] sm:$0xf]
        %v661 = vld [vmem:[#allocation10 + $0x14] sm:$0xf]
        %v662 = vld [vmem:[#allocation10 + $0x18] sm:$0xf]
        %v663 = vld [vmem:[#allocation10 + $0x1c] sm:$0xf]
        %v664 = vld [vmem:[#allocation10 + $0x20] sm:$0xf]
        %v665 = vld [vmem:[#allocation10 + $0x24] sm:$0xf]
        %v666 = vld [vmem:[#allocation10 + $0x28] sm:$0xf]
        %v667 = vld [vmem:[#allocation10 + $0x2c] sm:$0xf]
        %v668 = vld [vmem:[#allocation10 + $0x30] sm:$0xf]
        %v669 = vld [vmem:[#allocation10 + $0x34] sm:$0xf]
        %v670 = vld [vmem:[#allocation10 + $0x38] sm:$0xf]
        %v671 = vld [vmem:[#allocation10 + $0x3c] sm:$0xf]
        %v672 = vld [vmem:[%s6] sm:$0x1]
        %v674 = vlaneseq
        %v675 = vshrl.u32 %v674, 7
        %v676 = vsub.s32 0, %v675
        %v677 = vrot.slane %v672, %v676
        %v695 = vunpack.c.l.b16 %v656
        %v696 = vunpack.c.l.b16 %v657
        %v697 = vunpack.c.l.b16 %v658
        %v698 = vunpack.c.l.b16 %v659
        %v699 = vunpack.c.l.b16 %v660
        %v700 = vunpack.c.l.b16 %v661
        %v701 = vunpack.c.l.b16 %v662
        %v702 = vunpack.c.l.b16 %v663
        %v703 = vunpack.c.l.b16 %v664
        %v704 = vunpack.c.l.b16 %v665
        %v705 = vunpack.c.l.b16 %v666
        %v706 = vunpack.c.l.b16 %v667
        %v707 = vunpack.c.l.b16 %v668
        %v708 = vunpack.c.l.b16 %v669
        %v709 = vunpack.c.l.b16 %v670
        %v710 = vunpack.c.l.b16 %v671
        %v711 = vpack.c.b16 %v696, %v695
        %v712 = vpack.c.b16 %v698, %v697
        %v713 = vpack.c.b16 %v700, %v699
        %v714 = vpack.c.b16 %v702, %v701
        %v715 = vpack.c.b16 %v704, %v703
        %v716 = vpack.c.b16 %v706, %v705
        %v717 = vpack.c.b16 %v708, %v707
        %v718 = vpack.c.b16 %v710, %v709
        %727 = vmatprep.subr.bf16.mxu0 0
        %728 = vmatpush1.bf16.msra.mxu0 %v718
        %729 = vmatprep.subr.bf16.mxu0 0
        %730 = vmatpush1.bf16.msra.mxu0 %v717
        %731 = vmatprep.subr.bf16.mxu0 0
        %732 = vmatpush1.bf16.msra.mxu0 %v716
        %733 = vmatprep.subr.bf16.mxu0 0
        %734 = vmatpush1.bf16.msra.mxu0 %v715
        %735 = vmatprep.subr.bf16.mxu0 0
        %736 = vmatpush1.bf16.msra.mxu0 %v714
        %737 = vmatprep.subr.bf16.mxu0 0
        %738 = vmatpush1.bf16.msra.mxu0 %v713
        %739 = vmatprep.subr.bf16.mxu0 0
        %740 = vmatpush1.bf16.msra.mxu0 %v712
        %741 = vmatprep.subr.bf16.mxu0 0
        %742 = vmatpush1.bf16.msra.mxu0 %v711
        %743 = vmatprep.subr.bf16.mxu0 0
        %744 = vmatpush2.bf16.msra.mxu0 0
        %745 = vmatprep.subr.bf16.mxu0 0
        %746 = vmatpush2.bf16.msra.mxu0 0
        %747 = vmatprep.subr.bf16.mxu0 0
        %748 = vmatpush2.bf16.msra.mxu0 0
        %749 = vmatprep.subr.bf16.mxu0 0
        %750 = vmatpush2.bf16.msra.mxu0 0
        %751 = vmatprep.subr.bf16.mxu0 0
        %752 = vmatpush2.bf16.msra.mxu0 0
        %753 = vmatprep.subr.bf16.mxu0 0
        %754 = vmatpush2.bf16.msra.mxu0 0
        %755 = vmatprep.subr.bf16.mxu0 0
        %756 = vmatpush2.bf16.msra.mxu0 0
        %757 = vmatprep.subr.bf16.mxu0 0
        %758 = vmatpush2.bf16.msra.mxu0 0
        %759 = vmatprep.mubr.bf16.mxu0 0
        %760 = vmatmul.mubr.bf16.gmra.mxu0 %v655
        %v761 = vpop.f32.mrf.mxu0
        %v762 = vadd.f32 %v677, %v761
        %v763 = vpop.f32.mrf.mxu0
        %v764 = vpop.f32.mrf.mxu0
        %v765 = vpop.f32.mrf.mxu0
        %766 = vdwg.mxu0
        %v767 = vmax.f32 %v762, 0.0
        %768 = vst [vmem:[%s391] sm:$0xff] %v767
        %s769 = sand.u32 %s209, 1
        %s770 = scalar_lea.sflag [#allocation4], %s769
        %s771 = sand.u32 %s209, 1
        %s772 = smul.addr %s771, 8
        %s773 = scalar_lea.vmem [#allocation11], %s772
        // Predicated region
        $region69: #{tpu_custom_call.1} parent=47 // pred_check
          %p774 = pneg %p219
        $region70: #{tpu_custom_call.1} parent=47 // pred_check_branch
          %776 = sbr.rel (%p774) target = $region72
        $region71: #{tpu_custom_call.1} parent=47 // pred_region
          %s778 = ssub.s32 128, 128
          %779 = vsyncadd %s770, %s778
          %s780 = sadd.s32 %s33, %s32
          %s781 = smul.addr %s780, 128
          %s782 = scalar_lea.hbm %s7, %s781
          %s784 = sshll.u32 %s773, 4
          %s785 = int_to_ptr.vmem [resolvable:$true] %s784
          %787 = dma.vmem_to_hbm [thread:$0]  %s785, 128, %s782, %s770
        $region72: #{tpu_custom_call.1} parent=47 // pred_fallthru
          _
      $region48: #{tpu_custom_call.1} parent=5 // pred_fallthru
        _
      %p788 = scmp.le.s32.totalorder 2, %s23
      // Predicated region
      $region73: #{tpu_custom_call.1} parent=5 // pred_check
        %p789 = pneg %p788
      $region74: #{tpu_custom_call.1} parent=5 // pred_check_branch
        %791 = sbr.rel (%p789) target = $region76
      $region75: #{tpu_custom_call.1} parent=5 // pred_region
        %s792 = ssub.s32 %s23, 2
        // Predicated region
        $region77: #{tpu_custom_call.1} parent=75 // pred_check
          %p793 = pneg %p225
        $region78: #{tpu_custom_call.1} parent=75 // pred_check_branch
          %795 = sbr.rel (%p793) target = $region80
        $region79: #{tpu_custom_call.1} parent=75 // pred_region
          %s796 = sand.u32 %s210, 1
          %s797 = scalar_lea.sflag [#allocation4], %s796
          %s798 = sand.u32 %s210, 1
          %s799 = smul.addr %s798, 8
          %s800 = scalar_lea.vmem [#allocation11], %s799
          %801 = dma.done %s797, 128
        $region80: #{tpu_custom_call.1} parent=75 // pred_fallthru
          _
      $region76: #{tpu_custom_call.1} parent=5 // pred_fallthru
        _
    $region6: #{tpu_custom_call.1} parent=1 // loop_footer
      %s27 = sadd.s32 1, %s23
    $region7: #{tpu_custom_call.1} parent=1 // loop_footer_branch
      %22 = sbr.rel target = $region3
    $region8: #{tpu_custom_call.1} parent=1 // loop_exit
      _
    %802 = vsyncpa [#allocation3], 1
    %s803 = scalar_lea.sflag [#allocation3], 1
    %804 = vsyncpa %s803, 1
    %805 = vsyncpa [#allocation6], 1
    %s806 = scalar_lea.sflag [#allocation6], 1
    %807 = vsyncpa %s806, 1
    %808 = vsyncpa [#allocation9], 1
    %809 = vsyncpa [#allocation4], 1
    %s810 = scalar_lea.sflag [#allocation4], 1
    %811 = vsyncpa %s810, 1

</llo_original>
